<compile_context>
chip_gen: v7x
topology: tpu7x:2x2x1
jax: 0.10.0
libtpu: 0.0.40
codegen_flags: <defaults>
</compile_context>

<pallas_src>
import functools

import jax
import jax.numpy as jnp
from jax.experimental import pallas as pl
from jax.experimental.pallas import tpu as pltpu

TEXT_HID    = 768     # bert-base-uncased hidden_size
IMG_HID     = 2048    # resnet50 feature dim (fc replaced by Identity)
TEXT_PROJ   = 256     # bert_fc output dim
NUM_CLASSES = 3
N_PAD       = 128     # classifier dim padded to one full lane group


def _round_up(x, m):
    return ((x + m - 1) // m) * m


def _ablation_head_kernel(text_ref, img_ref, w1f_ref, w2i_ref, b_ref, out_ref):
    # out = text @ (w1 @ w2_text) + img @ w2_img + bias   (f32 MXU accumulate)
    o = jnp.dot(text_ref[...], w1f_ref[...], preferred_element_type=jnp.float32)
    o = o + jnp.dot(img_ref[...], w2i_ref[...], preferred_element_type=jnp.float32)
    out_ref[...] = o + b_ref[...]                         # [TB, 128] lane-dense


def prepare_params(params):
    """One-time fold + pad of the head parameters (do NOT call per forward)."""
    w1, b1, w2, b2 = params["w1"], params["b1"], params["w2"], params["b2"]
    w2t = w2[:TEXT_PROJ, :]                               # [256, 3]
    w2i = w2[TEXT_PROJ:, :]                               # [2048, 3]
    # Fold bert_fc into the final fc (no nonlinearity in between).
    w1f = w1 @ w2t                                        # [768, 3]
    bf = b1 @ w2t + b2                                    # [3]
    # Zero-pad the classifier dim 3 -> 128 for lane-dense MXU output / stores.
    w1f_p = jnp.zeros((TEXT_HID, N_PAD), jnp.float32).at[:, :NUM_CLASSES].set(w1f)
    w2i_p = jnp.zeros((IMG_HID, N_PAD), jnp.float32).at[:, :NUM_CLASSES].set(w2i)
    bf_p = jnp.zeros((1, N_PAD), jnp.float32).at[0, :NUM_CLASSES].set(bf)
    return {"w1f": w1f_p, "w2i": w2i_p, "bf": bf_p}


@functools.partial(jax.jit, static_argnames=("tb",))
def ablation_model_forward(text_pooled, image_feat, head_params, *, tb=512):
    """Fused Pallas head: (folded bert_fc -> fc) on backbone features.

    text_pooled: [B, 768]  float32 (stands in for bert(...).pooler_output)
    image_feat : [B, 2048] float32 (stands in for resnet50 trunk output)
    head_params: output of prepare_params().
    """
    B = text_pooled.shape[0]
    # Batch tile: multiple of 8 sublanes; shrink for tiny batches.
    TB = min(tb, _round_up(B, 8))
    Bp = _round_up(B, TB)
    if Bp != B:
        text_pooled = jnp.pad(text_pooled, ((0, Bp - B), (0, 0)))
        image_feat = jnp.pad(image_feat, ((0, Bp - B), (0, 0)))

    out_padded = pl.pallas_call(
        _ablation_head_kernel,
        out_shape=jax.ShapeDtypeStruct((Bp, N_PAD), jnp.float32),
        grid=(Bp // TB,),
        in_specs=[
            pl.BlockSpec((TB, TEXT_HID), lambda i: (i, 0)),      # text activations
            pl.BlockSpec((TB, IMG_HID), lambda i: (i, 0)),       # image activations
            pl.BlockSpec((TEXT_HID, N_PAD), lambda i: (0, 0)),   # folded text weight (resident)
            pl.BlockSpec((IMG_HID, N_PAD), lambda i: (0, 0)),    # image weight (resident)
            pl.BlockSpec((1, N_PAD), lambda i: (0, 0)),          # folded bias (resident)
        ],
        out_specs=pl.BlockSpec((TB, N_PAD), lambda i: (i, 0)),
        compiler_params=pltpu.CompilerParams(
            dimension_semantics=("parallel",),
            vmem_limit_bytes=32 * 1024 * 1024),
    )(text_pooled, image_feat,
      head_params["w1f"], head_params["w2i"], head_params["bf"])

    return out_padded[:B, :NUM_CLASSES]


def init_params(key):
    """Deterministic nn.Linear-style init (uniform +/- 1/sqrt(fan_in))."""
    k1, k2, k3, k4 = jax.random.split(key, 4)
    lim1 = 1.0 / jnp.sqrt(jnp.float32(TEXT_HID))
    lim2 = 1.0 / jnp.sqrt(jnp.float32(TEXT_PROJ + IMG_HID))
    return {
        "w1": jax.random.uniform(k1, (TEXT_HID, TEXT_PROJ),
                                 jnp.float32, -lim1, lim1),
        "b1": jax.random.uniform(k2, (TEXT_PROJ,), jnp.float32, -lim1, lim1),
        "w2": jax.random.uniform(k3, (TEXT_PROJ + IMG_HID, NUM_CLASSES),
                                 jnp.float32, -lim2, lim2),
        "b2": jax.random.uniform(k4, (NUM_CLASSES,), jnp.float32, -lim2, lim2),
    }


def reference_forward(text_pooled, image_feat, params):
    t = text_pooled @ params["w1"] + params["b1"]
    combined = jnp.concatenate([t, image_feat], axis=1)
    return combined @ params["w2"] + params["b2"]


if __name__ == "__main__":
    B = 2
    key = jax.random.PRNGKey(0)
    kp, kt, ki = jax.random.split(key, 3)

    params = init_params(kp)
    head_params = prepare_params(params)          # one-time fold + pad

    # Stand-ins for the frozen backbone outputs:
    text_pooled = jax.random.normal(kt, (B, TEXT_HID), jnp.float32)
    image_feat = jax.random.normal(ki, (B, IMG_HID), jnp.float32)

    out = ablation_model_forward(text_pooled, image_feat, head_params)
    out = jax.block_until_ready(out)

    ref = reference_forward(text_pooled, image_feat, params)
    assert out.shape == (B, NUM_CLASSES)
    # The fold reassociates f32 accumulation; allow a small tolerance.
    assert jnp.allclose(out, ref, atol=5e-4, rtol=1e-4), "mismatch vs reference"

    print("KERNEL_OK")
</pallas_src>

<mosaic_0001>
module attributes {stable_mosaic.version = 11 : i64} {
  func.func @_ablation_head_kernel(%arg0: i32, %arg1: memref<8x768xf32, #tpu.memory_space<vmem>>, %arg2: memref<8x2048xf32, #tpu.memory_space<vmem>>, %arg3: memref<768x128xf32, #tpu.memory_space<vmem>>, %arg4: memref<2048x128xf32, #tpu.memory_space<vmem>>, %arg5: memref<1x128xf32, #tpu.memory_space<vmem>>, %arg6: memref<8x128xf32, #tpu.memory_space<vmem>>) attributes {dimension_semantics = [#tpu.dimension_semantics<parallel>], iteration_bounds = array<i64: 1>, scalar_prefetch = 0 : i64, scratch_operands = 0 : i64, tpu.core_type = #tpu.core_type<tc>, window_params = [{transform_indices = @transform_0, window_bounds = array<i64: 8, 768>}, {transform_indices = @transform_1, window_bounds = array<i64: 8, 2048>}, {pipeline_mode = #tpu.pipeline_mode<synchronous>, transform_indices = @transform_2, window_bounds = array<i64: 768, 128>}, {pipeline_mode = #tpu.pipeline_mode<synchronous>, transform_indices = @transform_3, window_bounds = array<i64: 2048, 128>}, {pipeline_mode = #tpu.pipeline_mode<synchronous>, transform_indices = @transform_4, window_bounds = array<i64: 1, 128>}, {transform_indices = @transform_5, window_bounds = array<i64: 8, 128>}]} {
    %c0 = arith.constant 0 : index
    %c0_0 = arith.constant 0 : index
    %0 = vector.load %arg1[%c0, %c0_0] : memref<8x768xf32, #tpu.memory_space<vmem>>, vector<8x768xf32>
    %c0_1 = arith.constant 0 : index
    %c0_2 = arith.constant 0 : index
    %1 = vector.load %arg3[%c0_1, %c0_2] : memref<768x128xf32, #tpu.memory_space<vmem>>, vector<768x128xf32>
    %cst = arith.constant dense<0.000000e+00> : vector<8x128xf32>
    %2 = tpu.matmul %0, %1, %cst {dimension_numbers = #tpu.dot_dimension_numbers<[1], [0], [0], [1], [0, 0, 1, 1], [], []>} : vector<8x768xf32>, vector<768x128xf32>, vector<8x128xf32> -> vector<8x128xf32>
    %c0_3 = arith.constant 0 : index
    %c0_4 = arith.constant 0 : index
    %3 = vector.load %arg2[%c0_3, %c0_4] : memref<8x2048xf32, #tpu.memory_space<vmem>>, vector<8x2048xf32>
    %c0_5 = arith.constant 0 : index
    %c0_6 = arith.constant 0 : index
    %4 = vector.load %arg4[%c0_5, %c0_6] : memref<2048x128xf32, #tpu.memory_space<vmem>>, vector<2048x128xf32>
    %cst_7 = arith.constant dense<0.000000e+00> : vector<8x128xf32>
    %5 = tpu.matmul %3, %4, %cst_7 {dimension_numbers = #tpu.dot_dimension_numbers<[1], [0], [0], [1], [0, 0, 1, 1], [], []>} : vector<8x2048xf32>, vector<2048x128xf32>, vector<8x128xf32> -> vector<8x128xf32>
    %6 = arith.addf %2, %5 : vector<8x128xf32>
    %c0_8 = arith.constant 0 : index
    %c0_9 = arith.constant 0 : index
    %7 = vector.load %arg5[%c0_8, %c0_9] : memref<1x128xf32, #tpu.memory_space<vmem>>, vector<1x128xf32>
    %8 = vector.broadcast %7 : vector<1x128xf32> to vector<8x128xf32>
    %9 = arith.addf %6, %8 : vector<8x128xf32>
    %c0_10 = arith.constant 0 : index
    %c0_11 = arith.constant 0 : index
    %10 = vector.load %arg6[%c0_10, %c0_11] : memref<8x128xf32, #tpu.memory_space<vmem>>, vector<8x128xf32>
    tpu.vector_store %arg6[%c0_10, %c0_11], %9 {strides = array<i32>} : memref<8x128xf32, #tpu.memory_space<vmem>>, vector<8x128xf32>,
    return
  }
  func.func @transform_0(%arg0: i32) -> (i32, i32) {
    %c0_i32 = arith.constant 0 : i32
    %c0_i32_0 = arith.constant 0 : i32
    return %arg0, %c0_i32 : i32, i32
  }
  func.func @transform_1(%arg0: i32) -> (i32, i32) {
    %c0_i32 = arith.constant 0 : i32
    %c0_i32_0 = arith.constant 0 : i32
    return %arg0, %c0_i32 : i32, i32
  }
  func.func @transform_2(%arg0: i32) -> (i32, i32) {
    %c0_i32 = arith.constant 0 : i32
    %c0_i32_0 = arith.constant 0 : i32
    %c0_i32_1 = arith.constant 0 : i32
    return %c0_i32, %c0_i32_0 : i32, i32
  }
  func.func @transform_3(%arg0: i32) -> (i32, i32) {
    %c0_i32 = arith.constant 0 : i32
    %c0_i32_0 = arith.constant 0 : i32
    %c0_i32_1 = arith.constant 0 : i32
    return %c0_i32, %c0_i32_0 : i32, i32
  }
  func.func @transform_4(%arg0: i32) -> (i32, i32) {
    %c0_i32 = arith.constant 0 : i32
    %c0_i32_0 = arith.constant 0 : i32
    %c0_i32_1 = arith.constant 0 : i32
    return %c0_i32, %c0_i32_0 : i32, i32
  }
  func.func @transform_5(%arg0: i32) -> (i32, i32) {
    %c0_i32 = arith.constant 0 : i32
    %c0_i32_0 = arith.constant 0 : i32
    return %arg0, %c0_i32 : i32, i32
  }
}

</mosaic_0001>

<llo_original>
// kernel: ablation_model_forward.1
$region0: #{ablation_model_forward.1}
  #allocation0 [shape = 'u32[]', space=smem, size = 0x4, offset = 0x4, fixed_abs, tag = 'smem constant byte address 0x4 - core index']
  #allocation1 [shape = 'u32[144,128]{1,0:T(1,128)}', space=vmem, size = 0x12000, scoped, tag = 'internal scratch']
  %s0 = inlined_call_operand.vmem [shape: f32[8,768], index: 0, kind: input, shape index: {}]
  %s1 = inlined_call_operand.vmem [shape: f32[8,2048], index: 1, kind: input, shape index: {}]
  %s2 = inlined_call_operand.hbm [shape: f32[768,128], index: 2, kind: input, shape index: {}]
  %s3 = inlined_call_operand.hbm [shape: f32[2048,128], index: 3, kind: input, shape index: {}]
  %s4 = inlined_call_operand.vmem [shape: f32[1,128], index: 4, kind: input, shape index: {}]
  %s5 = inlined_call_operand.vmem [shape: f32[8,128], index: 5, kind: output, shape index: {}]
  %s6 = sld [smem:[#allocation0]]
  $region38: #{ablation_model_forward.1} parent=0
    _
  %s8 = ssub.s32 1, %s6
  %s9 = scalar_select 0, %s8, %s6
  $region1: #{ablation_model_forward.1} parent=0
    #allocation2 [shape = 'u8[393216]{0}', space=vmem, size = 0x60000, scoped, tag = 'input window, operand 2, single buffered']
    #allocation3 [shape = 's32[1]{0}', space=sflag, size = 0x4, scoped, tag = 'scoped memory for ablation_model_forward.1']
    #allocation4 [shape = 'u8[1048576]{0}', space=vmem, size = 0x100000, scoped, tag = 'input window, operand 3, single buffered']
    #allocation5 [shape = 's32[1]{0}', space=sflag, size = 0x4, scoped, tag = 'scoped memory for ablation_model_forward.1']
    %10 = vsyncpa [#allocation3], 0
    %11 = vsyncpa [#allocation5], 0
    // Predicated region
    $region2: #{ablation_model_forward.1} parent=1 // pred_check
      _
    $region3: #{ablation_model_forward.1} parent=1 // pred_check_branch
      %13 = sbr.rel (0) target = $region5
    $region4: #{ablation_model_forward.1} parent=1 // pred_region
      _
    $region5: #{ablation_model_forward.1} parent=1 // pred_fallthru
      _
    // Predicated region
    $region6: #{ablation_model_forward.1} parent=1 // pred_check
      _
    $region7: #{ablation_model_forward.1} parent=1 // pred_check_branch
      %15 = sbr.rel (0) target = $region9
    $region8: #{ablation_model_forward.1} parent=1 // pred_region
      _
    $region9: #{ablation_model_forward.1} parent=1 // pred_fallthru
      _
    // Predicated region
    $region10: #{ablation_model_forward.1} parent=1 // pred_check
      _
    $region11: #{ablation_model_forward.1} parent=1 // pred_check_branch
      %17 = sbr.rel (0) target = $region13
    $region12: #{ablation_model_forward.1} parent=1 // pred_region
      %s19 = ssub.s32 12288, 12288
      %20 = vsyncadd [#allocation3], %s19
      %s21 = sshll.u32 [#allocation2], 4
      %s22 = int_to_ptr.vmem [resolvable:$true] %s21
      %27 = dma.hbm_to_vmem [thread:$0]  %s2, 12288, %s22, [#allocation3], 128, 128, 8
    $region13: #{ablation_model_forward.1} parent=1 // pred_fallthru
      _
    // Predicated region
    $region14: #{ablation_model_forward.1} parent=1 // pred_check
      _
    $region15: #{ablation_model_forward.1} parent=1 // pred_check_branch
      %29 = sbr.rel (0) target = $region17
    $region16: #{ablation_model_forward.1} parent=1 // pred_region
      %s31 = ssub.s32 32768, 32768
      %32 = vsyncadd [#allocation5], %s31
      %s33 = sshll.u32 [#allocation4], 4
      %s34 = int_to_ptr.vmem [resolvable:$true] %s33
      %39 = dma.hbm_to_vmem [thread:$0]  %s3, 32768, %s34, [#allocation5], 128, 128, 8
    $region17: #{ablation_model_forward.1} parent=1 // pred_fallthru
      _
    // Predicated region
    $region18: #{ablation_model_forward.1} parent=1 // pred_check
      _
    $region19: #{ablation_model_forward.1} parent=1 // pred_check_branch
      %41 = sbr.rel (0) target = $region21
    $region20: #{ablation_model_forward.1} parent=1 // pred_region
      _
    $region21: #{ablation_model_forward.1} parent=1 // pred_fallthru
      _
    // Predicated region
    $region22: #{ablation_model_forward.1} parent=1 // pred_check
      _
    $region23: #{ablation_model_forward.1} parent=1 // pred_check_branch
      %43 = sbr.rel (0) target = $region25
    $region24: #{ablation_model_forward.1} parent=1 // pred_region
      %44 = dma.done [#allocation3], 12288
    $region25: #{ablation_model_forward.1} parent=1 // pred_fallthru
      _
    // Predicated region
    $region26: #{ablation_model_forward.1} parent=1 // pred_check
      _
    $region27: #{ablation_model_forward.1} parent=1 // pred_check_branch
      %46 = sbr.rel (0) target = $region29
    $region28: #{ablation_model_forward.1} parent=1 // pred_region
      %47 = dma.done [#allocation5], 32768
    $region29: #{ablation_model_forward.1} parent=1 // pred_fallthru
      _
    %v48 = vld [vmem:[%s0] sm:$0xff]
    %v49 = vld [vmem:[%s0 + $0x8] sm:$0xff]
    %v50 = vld [vmem:[%s0 + $0x10] sm:$0xff]
    %v51 = vld [vmem:[%s0 + $0x18] sm:$0xff]
    %v52 = vld [vmem:[%s0 + $0x20] sm:$0xff]
    %v53 = vld [vmem:[%s0 + $0x28] sm:$0xff]
    %v54 = vld [vmem:[#allocation2] sm:$0xff]
    %v55 = vld [vmem:[#allocation2 + $0x8] sm:$0xff]
    %v56 = vld [vmem:[#allocation2 + $0x10] sm:$0xff]
    %v57 = vld [vmem:[#allocation2 + $0x18] sm:$0xff]
    %v58 = vld [vmem:[#allocation2 + $0x20] sm:$0xff]
    %v59 = vld [vmem:[#allocation2 + $0x28] sm:$0xff]
    %v60 = vld [vmem:[#allocation2 + $0x30] sm:$0xff]
    %v61 = vld [vmem:[#allocation2 + $0x38] sm:$0xff]
    %v62 = vld [vmem:[#allocation2 + $0x40] sm:$0xff]
    %v63 = vld [vmem:[#allocation2 + $0x48] sm:$0xff]
    %v64 = vld [vmem:[#allocation2 + $0x50] sm:$0xff]
    %v65 = vld [vmem:[#allocation2 + $0x58] sm:$0xff]
    %v66 = vld [vmem:[#allocation2 + $0x60] sm:$0xff]
    %v67 = vld [vmem:[#allocation2 + $0x68] sm:$0xff]
    %v68 = vld [vmem:[#allocation2 + $0x70] sm:$0xff]
    %v69 = vld [vmem:[#allocation2 + $0x78] sm:$0xff]
    %v70 = vld [vmem:[#allocation2 + $0x80] sm:$0xff]
    %v71 = vld [vmem:[#allocation2 + $0x88] sm:$0xff]
    %v72 = vld [vmem:[#allocation2 + $0x90] sm:$0xff]
    %v73 = vld [vmem:[#allocation2 + $0x98] sm:$0xff]
    %v74 = vld [vmem:[#allocation2 + $0xa0] sm:$0xff]
    %v75 = vld [vmem:[#allocation2 + $0xa8] sm:$0xff]
    %v76 = vld [vmem:[#allocation2 + $0xb0] sm:$0xff]
    %v77 = vld [vmem:[#allocation2 + $0xb8] sm:$0xff]
    %v78 = vld [vmem:[#allocation2 + $0xc0] sm:$0xff]
    %v79 = vld [vmem:[#allocation2 + $0xc8] sm:$0xff]
    %v80 = vld [vmem:[#allocation2 + $0xd0] sm:$0xff]
    %v81 = vld [vmem:[#allocation2 + $0xd8] sm:$0xff]
    %v82 = vld [vmem:[#allocation2 + $0xe0] sm:$0xff]
    %v83 = vld [vmem:[#allocation2 + $0xe8] sm:$0xff]
    %v84 = vld [vmem:[#allocation2 + $0xf0] sm:$0xff]
    %v85 = vld [vmem:[#allocation2 + $0xf8] sm:$0xff]
    %v86 = vld [vmem:[#allocation2 + $0x100] sm:$0xff]
    %v87 = vld [vmem:[#allocation2 + $0x108] sm:$0xff]
    %v88 = vld [vmem:[#allocation2 + $0x110] sm:$0xff]
    %v89 = vld [vmem:[#allocation2 + $0x118] sm:$0xff]
    %v90 = vld [vmem:[#allocation2 + $0x120] sm:$0xff]
    %v91 = vld [vmem:[#allocation2 + $0x128] sm:$0xff]
    %v92 = vld [vmem:[#allocation2 + $0x130] sm:$0xff]
    %v93 = vld [vmem:[#allocation2 + $0x138] sm:$0xff]
    %v94 = vld [vmem:[#allocation2 + $0x140] sm:$0xff]
    %v95 = vld [vmem:[#allocation2 + $0x148] sm:$0xff]
    %v96 = vld [vmem:[#allocation2 + $0x150] sm:$0xff]
    %v97 = vld [vmem:[#allocation2 + $0x158] sm:$0xff]
    %v98 = vld [vmem:[#allocation2 + $0x160] sm:$0xff]
    %v99 = vld [vmem:[#allocation2 + $0x168] sm:$0xff]
    %v100 = vld [vmem:[#allocation2 + $0x170] sm:$0xff]
    %v101 = vld [vmem:[#allocation2 + $0x178] sm:$0xff]
    %v102 = vld [vmem:[#allocation2 + $0x180] sm:$0xff]
    %v103 = vld [vmem:[#allocation2 + $0x188] sm:$0xff]
    %v104 = vld [vmem:[#allocation2 + $0x190] sm:$0xff]
    %v105 = vld [vmem:[#allocation2 + $0x198] sm:$0xff]
    %v106 = vld [vmem:[#allocation2 + $0x1a0] sm:$0xff]
    %v107 = vld [vmem:[#allocation2 + $0x1a8] sm:$0xff]
    %v108 = vld [vmem:[#allocation2 + $0x1b0] sm:$0xff]
    %v109 = vld [vmem:[#allocation2 + $0x1b8] sm:$0xff]
    %v110 = vld [vmem:[#allocation2 + $0x1c0] sm:$0xff]
    %v111 = vld [vmem:[#allocation2 + $0x1c8] sm:$0xff]
    %v112 = vld [vmem:[#allocation2 + $0x1d0] sm:$0xff]
    %v113 = vld [vmem:[#allocation2 + $0x1d8] sm:$0xff]
    %v114 = vld [vmem:[#allocation2 + $0x1e0] sm:$0xff]
    %v115 = vld [vmem:[#allocation2 + $0x1e8] sm:$0xff]
    %v116 = vld [vmem:[#allocation2 + $0x1f0] sm:$0xff]
    %v117 = vld [vmem:[#allocation2 + $0x1f8] sm:$0xff]
    %v118 = vld [vmem:[#allocation2 + $0x200] sm:$0xff]
    %v119 = vld [vmem:[#allocation2 + $0x208] sm:$0xff]
    %v120 = vld [vmem:[#allocation2 + $0x210] sm:$0xff]
    %v121 = vld [vmem:[#allocation2 + $0x218] sm:$0xff]
    %v122 = vld [vmem:[#allocation2 + $0x220] sm:$0xff]
    %v123 = vld [vmem:[#allocation2 + $0x228] sm:$0xff]
    %v124 = vld [vmem:[#allocation2 + $0x230] sm:$0xff]
    %v125 = vld [vmem:[#allocation2 + $0x238] sm:$0xff]
    %v126 = vld [vmem:[#allocation2 + $0x240] sm:$0xff]
    %v127 = vld [vmem:[#allocation2 + $0x248] sm:$0xff]
    %v128 = vld [vmem:[#allocation2 + $0x250] sm:$0xff]
    %v129 = vld [vmem:[#allocation2 + $0x258] sm:$0xff]
    %v130 = vld [vmem:[#allocation2 + $0x260] sm:$0xff]
    %v131 = vld [vmem:[#allocation2 + $0x268] sm:$0xff]
    %v132 = vld [vmem:[#allocation2 + $0x270] sm:$0xff]
    %v133 = vld [vmem:[#allocation2 + $0x278] sm:$0xff]
    %v134 = vld [vmem:[#allocation2 + $0x280] sm:$0xff]
    %v135 = vld [vmem:[#allocation2 + $0x288] sm:$0xff]
    %v136 = vld [vmem:[#allocation2 + $0x290] sm:$0xff]
    %v137 = vld [vmem:[#allocation2 + $0x298] sm:$0xff]
    %v138 = vld [vmem:[#allocation2 + $0x2a0] sm:$0xff]
    %v139 = vld [vmem:[#allocation2 + $0x2a8] sm:$0xff]
    %v140 = vld [vmem:[#allocation2 + $0x2b0] sm:$0xff]
    %v141 = vld [vmem:[#allocation2 + $0x2b8] sm:$0xff]
    %v142 = vld [vmem:[#allocation2 + $0x2c0] sm:$0xff]
    %v143 = vld [vmem:[#allocation2 + $0x2c8] sm:$0xff]
    %v144 = vld [vmem:[#allocation2 + $0x2d0] sm:$0xff]
    %v145 = vld [vmem:[#allocation2 + $0x2d8] sm:$0xff]
    %v146 = vld [vmem:[#allocation2 + $0x2e0] sm:$0xff]
    %v147 = vld [vmem:[#allocation2 + $0x2e8] sm:$0xff]
    %v148 = vld [vmem:[#allocation2 + $0x2f0] sm:$0xff]
    %v149 = vld [vmem:[#allocation2 + $0x2f8] sm:$0xff]
    %v150 = vld [vmem:[%s1] sm:$0xff]
    %v151 = vld [vmem:[%s1 + $0x8] sm:$0xff]
    %v152 = vld [vmem:[%s1 + $0x10] sm:$0xff]
    %v153 = vld [vmem:[%s1 + $0x18] sm:$0xff]
    %v154 = vld [vmem:[%s1 + $0x20] sm:$0xff]
    %v155 = vld [vmem:[%s1 + $0x28] sm:$0xff]
    %v156 = vld [vmem:[%s1 + $0x30] sm:$0xff]
    %v157 = vld [vmem:[%s1 + $0x38] sm:$0xff]
    %v158 = vld [vmem:[%s1 + $0x40] sm:$0xff]
    %v159 = vld [vmem:[%s1 + $0x48] sm:$0xff]
    %v160 = vld [vmem:[%s1 + $0x50] sm:$0xff]
    %v161 = vld [vmem:[%s1 + $0x58] sm:$0xff]
    %v162 = vld [vmem:[%s1 + $0x60] sm:$0xff]
    %v163 = vld [vmem:[%s1 + $0x68] sm:$0xff]
    %v164 = vld [vmem:[%s1 + $0x70] sm:$0xff]
    %v165 = vld [vmem:[%s1 + $0x78] sm:$0xff]
    %v166 = vld [vmem:[#allocation4] sm:$0xff]
    %v167 = vld [vmem:[#allocation4 + $0x8] sm:$0xff]
    %v168 = vld [vmem:[#allocation4 + $0x10] sm:$0xff]
    %v169 = vld [vmem:[#allocation4 + $0x18] sm:$0xff]
    %v170 = vld [vmem:[#allocation4 + $0x20] sm:$0xff]
    %v171 = vld [vmem:[#allocation4 + $0x28] sm:$0xff]
    %v172 = vld [vmem:[#allocation4 + $0x30] sm:$0xff]
    %v173 = vld [vmem:[#allocation4 + $0x38] sm:$0xff]
    %v174 = vld [vmem:[#allocation4 + $0x40] sm:$0xff]
    %v175 = vld [vmem:[#allocation4 + $0x48] sm:$0xff]
    %v176 = vld [vmem:[#allocation4 + $0x50] sm:$0xff]
    %v177 = vld [vmem:[#allocation4 + $0x58] sm:$0xff]
    %v178 = vld [vmem:[#allocation4 + $0x60] sm:$0xff]
    %v179 = vld [vmem:[#allocation4 + $0x68] sm:$0xff]
    %v180 = vld [vmem:[#allocation4 + $0x70] sm:$0xff]
    %v181 = vld [vmem:[#allocation4 + $0x78] sm:$0xff]
    %v182 = vld [vmem:[#allocation4 + $0x80] sm:$0xff]
    %v183 = vld [vmem:[#allocation4 + $0x88] sm:$0xff]
    %v184 = vld [vmem:[#allocation4 + $0x90] sm:$0xff]
    %v185 = vld [vmem:[#allocation4 + $0x98] sm:$0xff]
    %v186 = vld [vmem:[#allocation4 + $0xa0] sm:$0xff]
    %v187 = vld [vmem:[#allocation4 + $0xa8] sm:$0xff]
    %v188 = vld [vmem:[#allocation4 + $0xb0] sm:$0xff]
    %v189 = vld [vmem:[#allocation4 + $0xb8] sm:$0xff]
    %v190 = vld [vmem:[#allocation4 + $0xc0] sm:$0xff]
    %v191 = vld [vmem:[#allocation4 + $0xc8] sm:$0xff]
    %v192 = vld [vmem:[#allocation4 + $0xd0] sm:$0xff]
    %v193 = vld [vmem:[#allocation4 + $0xd8] sm:$0xff]
    %v194 = vld [vmem:[#allocation4 + $0xe0] sm:$0xff]
    %v195 = vld [vmem:[#allocation4 + $0xe8] sm:$0xff]
    %v196 = vld [vmem:[#allocation4 + $0xf0] sm:$0xff]
    %v197 = vld [vmem:[#allocation4 + $0xf8] sm:$0xff]
    %v198 = vld [vmem:[#allocation4 + $0x100] sm:$0xff]
    %v199 = vld [vmem:[#allocation4 + $0x108] sm:$0xff]
    %v200 = vld [vmem:[#allocation4 + $0x110] sm:$0xff]
    %v201 = vld [vmem:[#allocation4 + $0x118] sm:$0xff]
    %v202 = vld [vmem:[#allocation4 + $0x120] sm:$0xff]
    %v203 = vld [vmem:[#allocation4 + $0x128] sm:$0xff]
    %v204 = vld [vmem:[#allocation4 + $0x130] sm:$0xff]
    %v205 = vld [vmem:[#allocation4 + $0x138] sm:$0xff]
    %v206 = vld [vmem:[#allocation4 + $0x140] sm:$0xff]
    %v207 = vld [vmem:[#allocation4 + $0x148] sm:$0xff]
    %v208 = vld [vmem:[#allocation4 + $0x150] sm:$0xff]
    %v209 = vld [vmem:[#allocation4 + $0x158] sm:$0xff]
    %v210 = vld [vmem:[#allocation4 + $0x160] sm:$0xff]
    %v211 = vld [vmem:[#allocation4 + $0x168] sm:$0xff]
    %v212 = vld [vmem:[#allocation4 + $0x170] sm:$0xff]
    %v213 = vld [vmem:[#allocation4 + $0x178] sm:$0xff]
    %v214 = vld [vmem:[#allocation4 + $0x180] sm:$0xff]
    %v215 = vld [vmem:[#allocation4 + $0x188] sm:$0xff]
    %v216 = vld [vmem:[#allocation4 + $0x190] sm:$0xff]
    %v217 = vld [vmem:[#allocation4 + $0x198] sm:$0xff]
    %v218 = vld [vmem:[#allocation4 + $0x1a0] sm:$0xff]
    %v219 = vld [vmem:[#allocation4 + $0x1a8] sm:$0xff]
    %v220 = vld [vmem:[#allocation4 + $0x1b0] sm:$0xff]
    %v221 = vld [vmem:[#allocation4 + $0x1b8] sm:$0xff]
    %v222 = vld [vmem:[#allocation4 + $0x1c0] sm:$0xff]
    %v223 = vld [vmem:[#allocation4 + $0x1c8] sm:$0xff]
    %v224 = vld [vmem:[#allocation4 + $0x1d0] sm:$0xff]
    %v225 = vld [vmem:[#allocation4 + $0x1d8] sm:$0xff]
    %v226 = vld [vmem:[#allocation4 + $0x1e0] sm:$0xff]
    %v227 = vld [vmem:[#allocation4 + $0x1e8] sm:$0xff]
    %v228 = vld [vmem:[#allocation4 + $0x1f0] sm:$0xff]
    %v229 = vld [vmem:[#allocation4 + $0x1f8] sm:$0xff]
    %v230 = vld [vmem:[#allocation4 + $0x200] sm:$0xff]
    %v231 = vld [vmem:[#allocation4 + $0x208] sm:$0xff]
    %v232 = vld [vmem:[#allocation4 + $0x210] sm:$0xff]
    %v233 = vld [vmem:[#allocation4 + $0x218] sm:$0xff]
    %v234 = vld [vmem:[#allocation4 + $0x220] sm:$0xff]
    %v235 = vld [vmem:[#allocation4 + $0x228] sm:$0xff]
    %v236 = vld [vmem:[#allocation4 + $0x230] sm:$0xff]
    %v237 = vld [vmem:[#allocation4 + $0x238] sm:$0xff]
    %v238 = vld [vmem:[#allocation4 + $0x240] sm:$0xff]
    %v239 = vld [vmem:[#allocation4 + $0x248] sm:$0xff]
    %v240 = vld [vmem:[#allocation4 + $0x250] sm:$0xff]
    %v241 = vld [vmem:[#allocation4 + $0x258] sm:$0xff]
    %v242 = vld [vmem:[#allocation4 + $0x260] sm:$0xff]
    %v243 = vld [vmem:[#allocation4 + $0x268] sm:$0xff]
    %v244 = vld [vmem:[#allocation4 + $0x270] sm:$0xff]
    %v245 = vld [vmem:[#allocation4 + $0x278] sm:$0xff]
    %v246 = vld [vmem:[#allocation4 + $0x280] sm:$0xff]
    %v247 = vld [vmem:[#allocation4 + $0x288] sm:$0xff]
    %v248 = vld [vmem:[#allocation4 + $0x290] sm:$0xff]
    %v249 = vld [vmem:[#allocation4 + $0x298] sm:$0xff]
    %v250 = vld [vmem:[#allocation4 + $0x2a0] sm:$0xff]
    %v251 = vld [vmem:[#allocation4 + $0x2a8] sm:$0xff]
    %v252 = vld [vmem:[#allocation4 + $0x2b0] sm:$0xff]
    %v253 = vld [vmem:[#allocation4 + $0x2b8] sm:$0xff]
    %v254 = vld [vmem:[#allocation4 + $0x2c0] sm:$0xff]
    %v255 = vld [vmem:[#allocation4 + $0x2c8] sm:$0xff]
    %v256 = vld [vmem:[#allocation4 + $0x2d0] sm:$0xff]
    %v257 = vld [vmem:[#allocation4 + $0x2d8] sm:$0xff]
    %v258 = vld [vmem:[#allocation4 + $0x2e0] sm:$0xff]
    %v259 = vld [vmem:[#allocation4 + $0x2e8] sm:$0xff]
    %v260 = vld [vmem:[#allocation4 + $0x2f0] sm:$0xff]
    %v261 = vld [vmem:[#allocation4 + $0x2f8] sm:$0xff]
    %v262 = vld [vmem:[#allocation4 + $0x300] sm:$0xff]
    %v263 = vld [vmem:[#allocation4 + $0x308] sm:$0xff]
    %v264 = vld [vmem:[#allocation4 + $0x310] sm:$0xff]
    %v265 = vld [vmem:[#allocation4 + $0x318] sm:$0xff]
    %v266 = vld [vmem:[#allocation4 + $0x320] sm:$0xff]
    %v267 = vld [vmem:[#allocation4 + $0x328] sm:$0xff]
    %v268 = vld [vmem:[#allocation4 + $0x330] sm:$0xff]
    %v269 = vld [vmem:[#allocation4 + $0x338] sm:$0xff]
    %v270 = vld [vmem:[#allocation4 + $0x340] sm:$0xff]
    %v271 = vld [vmem:[#allocation4 + $0x348] sm:$0xff]
    %v272 = vld [vmem:[#allocation4 + $0x350] sm:$0xff]
    %v273 = vld [vmem:[#allocation4 + $0x358] sm:$0xff]
    %v274 = vld [vmem:[#allocation4 + $0x360] sm:$0xff]
    %v275 = vld [vmem:[#allocation4 + $0x368] sm:$0xff]
    %v276 = vld [vmem:[#allocation4 + $0x370] sm:$0xff]
    %v277 = vld [vmem:[#allocation4 + $0x378] sm:$0xff]
    %v278 = vld [vmem:[#allocation4 + $0x380] sm:$0xff]
    %v279 = vld [vmem:[#allocation4 + $0x388] sm:$0xff]
    %v280 = vld [vmem:[#allocation4 + $0x390] sm:$0xff]
    %v281 = vld [vmem:[#allocation4 + $0x398] sm:$0xff]
    %v282 = vld [vmem:[#allocation4 + $0x3a0] sm:$0xff]
    %v283 = vld [vmem:[#allocation4 + $0x3a8] sm:$0xff]
    %v284 = vld [vmem:[#allocation4 + $0x3b0] sm:$0xff]
    %v285 = vld [vmem:[#allocation4 + $0x3b8] sm:$0xff]
    %v286 = vld [vmem:[#allocation4 + $0x3c0] sm:$0xff]
    %v287 = vld [vmem:[#allocation4 + $0x3c8] sm:$0xff]
    %v288 = vld [vmem:[#allocation4 + $0x3d0] sm:$0xff]
    %v289 = vld [vmem:[#allocation4 + $0x3d8] sm:$0xff]
    %v290 = vld [vmem:[#allocation4 + $0x3e0] sm:$0xff]
    %v291 = vld [vmem:[#allocation4 + $0x3e8] sm:$0xff]
    %v292 = vld [vmem:[#allocation4 + $0x3f0] sm:$0xff]
    %v293 = vld [vmem:[#allocation4 + $0x3f8] sm:$0xff]
    %v294 = vld [vmem:[#allocation4 + $0x400] sm:$0xff]
    %v295 = vld [vmem:[#allocation4 + $0x408] sm:$0xff]
    %v296 = vld [vmem:[#allocation4 + $0x410] sm:$0xff]
    %v297 = vld [vmem:[#allocation4 + $0x418] sm:$0xff]
    %v298 = vld [vmem:[#allocation4 + $0x420] sm:$0xff]
    %v299 = vld [vmem:[#allocation4 + $0x428] sm:$0xff]
    %v300 = vld [vmem:[#allocation4 + $0x430] sm:$0xff]
    %v301 = vld [vmem:[#allocation4 + $0x438] sm:$0xff]
    %v302 = vld [vmem:[#allocation4 + $0x440] sm:$0xff]
    %v303 = vld [vmem:[#allocation4 + $0x448] sm:$0xff]
    %v304 = vld [vmem:[#allocation4 + $0x450] sm:$0xff]
    %v305 = vld [vmem:[#allocation4 + $0x458] sm:$0xff]
    %v306 = vld [vmem:[#allocation4 + $0x460] sm:$0xff]
    %v307 = vld [vmem:[#allocation4 + $0x468] sm:$0xff]
    %v308 = vld [vmem:[#allocation4 + $0x470] sm:$0xff]
    %v309 = vld [vmem:[#allocation4 + $0x478] sm:$0xff]
    %v310 = vld [vmem:[#allocation4 + $0x480] sm:$0xff]
    %v311 = vld [vmem:[#allocation4 + $0x488] sm:$0xff]
    %v312 = vld [vmem:[#allocation4 + $0x490] sm:$0xff]
    %v313 = vld [vmem:[#allocation4 + $0x498] sm:$0xff]
    %v314 = vld [vmem:[#allocation4 + $0x4a0] sm:$0xff]
    %v315 = vld [vmem:[#allocation4 + $0x4a8] sm:$0xff]
    %v316 = vld [vmem:[#allocation4 + $0x4b0] sm:$0xff]
    %v317 = vld [vmem:[#allocation4 + $0x4b8] sm:$0xff]
    %v318 = vld [vmem:[#allocation4 + $0x4c0] sm:$0xff]
    %v319 = vld [vmem:[#allocation4 + $0x4c8] sm:$0xff]
    %v320 = vld [vmem:[#allocation4 + $0x4d0] sm:$0xff]
    %v321 = vld [vmem:[#allocation4 + $0x4d8] sm:$0xff]
    %v322 = vld [vmem:[#allocation4 + $0x4e0] sm:$0xff]
    %v323 = vld [vmem:[#allocation4 + $0x4e8] sm:$0xff]
    %v324 = vld [vmem:[#allocation4 + $0x4f0] sm:$0xff]
    %v325 = vld [vmem:[#allocation4 + $0x4f8] sm:$0xff]
    %v326 = vld [vmem:[#allocation4 + $0x500] sm:$0xff]
    %v327 = vld [vmem:[#allocation4 + $0x508] sm:$0xff]
    %v328 = vld [vmem:[#allocation4 + $0x510] sm:$0xff]
    %v329 = vld [vmem:[#allocation4 + $0x518] sm:$0xff]
    %v330 = vld [vmem:[#allocation4 + $0x520] sm:$0xff]
    %v331 = vld [vmem:[#allocation4 + $0x528] sm:$0xff]
    %v332 = vld [vmem:[#allocation4 + $0x530] sm:$0xff]
    %v333 = vld [vmem:[#allocation4 + $0x538] sm:$0xff]
    %v334 = vld [vmem:[#allocation4 + $0x540] sm:$0xff]
    %v335 = vld [vmem:[#allocation4 + $0x548] sm:$0xff]
    %v336 = vld [vmem:[#allocation4 + $0x550] sm:$0xff]
    %v337 = vld [vmem:[#allocation4 + $0x558] sm:$0xff]
    %v338 = vld [vmem:[#allocation4 + $0x560] sm:$0xff]
    %v339 = vld [vmem:[#allocation4 + $0x568] sm:$0xff]
    %v340 = vld [vmem:[#allocation4 + $0x570] sm:$0xff]
    %v341 = vld [vmem:[#allocation4 + $0x578] sm:$0xff]
    %v342 = vld [vmem:[#allocation4 + $0x580] sm:$0xff]
    %v343 = vld [vmem:[#allocation4 + $0x588] sm:$0xff]
    %v344 = vld [vmem:[#allocation4 + $0x590] sm:$0xff]
    %v345 = vld [vmem:[#allocation4 + $0x598] sm:$0xff]
    %v346 = vld [vmem:[#allocation4 + $0x5a0] sm:$0xff]
    %v347 = vld [vmem:[#allocation4 + $0x5a8] sm:$0xff]
    %v348 = vld [vmem:[#allocation4 + $0x5b0] sm:$0xff]
    %v349 = vld [vmem:[#allocation4 + $0x5b8] sm:$0xff]
    %v350 = vld [vmem:[#allocation4 + $0x5c0] sm:$0xff]
    %v351 = vld [vmem:[#allocation4 + $0x5c8] sm:$0xff]
    %v352 = vld [vmem:[#allocation4 + $0x5d0] sm:$0xff]
    %v353 = vld [vmem:[#allocation4 + $0x5d8] sm:$0xff]
    %v354 = vld [vmem:[#allocation4 + $0x5e0] sm:$0xff]
    %v355 = vld [vmem:[#allocation4 + $0x5e8] sm:$0xff]
    %v356 = vld [vmem:[#allocation4 + $0x5f0] sm:$0xff]
    %v357 = vld [vmem:[#allocation4 + $0x5f8] sm:$0xff]
    %v358 = vld [vmem:[#allocation4 + $0x600] sm:$0xff]
    %v359 = vld [vmem:[#allocation4 + $0x608] sm:$0xff]
    %v360 = vld [vmem:[#allocation4 + $0x610] sm:$0xff]
    %v361 = vld [vmem:[#allocation4 + $0x618] sm:$0xff]
    %v362 = vld [vmem:[#allocation4 + $0x620] sm:$0xff]
    %v363 = vld [vmem:[#allocation4 + $0x628] sm:$0xff]
    %v364 = vld [vmem:[#allocation4 + $0x630] sm:$0xff]
    %v365 = vld [vmem:[#allocation4 + $0x638] sm:$0xff]
    %v366 = vld [vmem:[#allocation4 + $0x640] sm:$0xff]
    %v367 = vld [vmem:[#allocation4 + $0x648] sm:$0xff]
    %v368 = vld [vmem:[#allocation4 + $0x650] sm:$0xff]
    %v369 = vld [vmem:[#allocation4 + $0x658] sm:$0xff]
    %v370 = vld [vmem:[#allocation4 + $0x660] sm:$0xff]
    %v371 = vld [vmem:[#allocation4 + $0x668] sm:$0xff]
    %v372 = vld [vmem:[#allocation4 + $0x670] sm:$0xff]
    %v373 = vld [vmem:[#allocation4 + $0x678] sm:$0xff]
    %v374 = vld [vmem:[#allocation4 + $0x680] sm:$0xff]
    %v375 = vld [vmem:[#allocation4 + $0x688] sm:$0xff]
    %v376 = vld [vmem:[#allocation4 + $0x690] sm:$0xff]
    %v377 = vld [vmem:[#allocation4 + $0x698] sm:$0xff]
    %v378 = vld [vmem:[#allocation4 + $0x6a0] sm:$0xff]
    %v379 = vld [vmem:[#allocation4 + $0x6a8] sm:$0xff]
    %v380 = vld [vmem:[#allocation4 + $0x6b0] sm:$0xff]
    %v381 = vld [vmem:[#allocation4 + $0x6b8] sm:$0xff]
    %v382 = vld [vmem:[#allocation4 + $0x6c0] sm:$0xff]
    %v383 = vld [vmem:[#allocation4 + $0x6c8] sm:$0xff]
    %v384 = vld [vmem:[#allocation4 + $0x6d0] sm:$0xff]
    %v385 = vld [vmem:[#allocation4 + $0x6d8] sm:$0xff]
    %v386 = vld [vmem:[#allocation4 + $0x6e0] sm:$0xff]
    %v387 = vld [vmem:[#allocation4 + $0x6e8] sm:$0xff]
    %v388 = vld [vmem:[#allocation4 + $0x6f0] sm:$0xff]
    %v389 = vld [vmem:[#allocation4 + $0x6f8] sm:$0xff]
    %v390 = vld [vmem:[#allocation4 + $0x700] sm:$0xff]
    %v391 = vld [vmem:[#allocation4 + $0x708] sm:$0xff]
    %v392 = vld [vmem:[#allocation4 + $0x710] sm:$0xff]
    %v393 = vld [vmem:[#allocation4 + $0x718] sm:$0xff]
    %v394 = vld [vmem:[#allocation4 + $0x720] sm:$0xff]
    %v395 = vld [vmem:[#allocation4 + $0x728] sm:$0xff]
    %v396 = vld [vmem:[#allocation4 + $0x730] sm:$0xff]
    %v397 = vld [vmem:[#allocation4 + $0x738] sm:$0xff]
    %v398 = vld [vmem:[#allocation4 + $0x740] sm:$0xff]
    %v399 = vld [vmem:[#allocation4 + $0x748] sm:$0xff]
    %v400 = vld [vmem:[#allocation4 + $0x750] sm:$0xff]
    %v401 = vld [vmem:[#allocation4 + $0x758] sm:$0xff]
    %v402 = vld [vmem:[#allocation4 + $0x760] sm:$0xff]
    %v403 = vld [vmem:[#allocation4 + $0x768] sm:$0xff]
    %v404 = vld [vmem:[#allocation4 + $0x770] sm:$0xff]
    %v405 = vld [vmem:[#allocation4 + $0x778] sm:$0xff]
    %v406 = vld [vmem:[#allocation4 + $0x780] sm:$0xff]
    %v407 = vld [vmem:[#allocation4 + $0x788] sm:$0xff]
    %v408 = vld [vmem:[#allocation4 + $0x790] sm:$0xff]
    %v409 = vld [vmem:[#allocation4 + $0x798] sm:$0xff]
    %v410 = vld [vmem:[#allocation4 + $0x7a0] sm:$0xff]
    %v411 = vld [vmem:[#allocation4 + $0x7a8] sm:$0xff]
    %v412 = vld [vmem:[#allocation4 + $0x7b0] sm:$0xff]
    %v413 = vld [vmem:[#allocation4 + $0x7b8] sm:$0xff]
    %v414 = vld [vmem:[#allocation4 + $0x7c0] sm:$0xff]
    %v415 = vld [vmem:[#allocation4 + $0x7c8] sm:$0xff]
    %v416 = vld [vmem:[#allocation4 + $0x7d0] sm:$0xff]
    %v417 = vld [vmem:[#allocation4 + $0x7d8] sm:$0xff]
    %v418 = vld [vmem:[#allocation4 + $0x7e0] sm:$0xff]
    %v419 = vld [vmem:[#allocation4 + $0x7e8] sm:$0xff]
    %v420 = vld [vmem:[#allocation4 + $0x7f0] sm:$0xff]
    %v421 = vld [vmem:[#allocation4 + $0x7f8] sm:$0xff]
    %422 = vmatprep.subr.mxu0 0.0
    %423 = vmatpush1.msra.mxu0 %v166
    %424 = vmatprep.subr.mxu0 0.0
    %425 = vmatpush1.msra.mxu0 %v167
    %426 = vmatprep.subr.mxu0 0.0
    %427 = vmatpush1.msra.mxu0 %v168
    %428 = vmatprep.subr.mxu0 0.0
    %429 = vmatpush1.msra.mxu0 %v169
    %430 = vmatprep.subr.mxu0 0.0
    %431 = vmatpush1.msra.mxu0 %v170
    %432 = vmatprep.subr.mxu0 0.0
    %433 = vmatpush1.msra.mxu0 %v171
    %434 = vmatprep.subr.mxu0 0.0
    %435 = vmatpush1.msra.mxu0 %v172
    %436 = vmatprep.subr.mxu0 0.0
    %437 = vmatpush1.msra.mxu0 %v173
    %438 = vmatprep.subr.mxu0 0.0
    %439 = vmatpush1.msra.mxu0 %v174
    %440 = vmatprep.subr.mxu0 0.0
    %441 = vmatpush1.msra.mxu0 %v175
    %442 = vmatprep.subr.mxu0 0.0
    %443 = vmatpush1.msra.mxu0 %v176
    %444 = vmatprep.subr.mxu0 0.0
    %445 = vmatpush1.msra.mxu0 %v177
    %446 = vmatprep.subr.mxu0 0.0
    %447 = vmatpush1.msra.mxu0 %v178
    %448 = vmatprep.subr.mxu0 0.0
    %449 = vmatpush1.msra.mxu0 %v179
    %450 = vmatprep.subr.mxu0 0.0
    %451 = vmatpush1.msra.mxu0 %v180
    %452 = vmatprep.subr.mxu0 0.0
    %453 = vmatpush1.msra.mxu0 %v181
    %454 = vmatprep.subr.mxu0 0.0
    %455 = vmatpush1.msra.mxu0 %v182
    %456 = vmatprep.subr.mxu0 0.0
    %457 = vmatpush1.msra.mxu0 %v183
    %458 = vmatprep.subr.mxu0 0.0
    %459 = vmatpush1.msra.mxu0 %v184
    %460 = vmatprep.subr.mxu0 0.0
    %461 = vmatpush1.msra.mxu0 %v185
    %462 = vmatprep.subr.mxu0 0.0
    %463 = vmatpush1.msra.mxu0 %v186
    %464 = vmatprep.subr.mxu0 0.0
    %465 = vmatpush1.msra.mxu0 %v187
    %466 = vmatprep.subr.mxu0 0.0
    %467 = vmatpush1.msra.mxu0 %v188
    %468 = vmatprep.subr.mxu0 0.0
    %469 = vmatpush1.msra.mxu0 %v189
    %470 = vmatprep.subr.mxu0 0.0
    %471 = vmatpush1.msra.mxu0 %v190
    %472 = vmatprep.subr.mxu0 0.0
    %473 = vmatpush1.msra.mxu0 %v191
    %474 = vmatprep.subr.mxu0 0.0
    %475 = vmatpush1.msra.mxu0 %v192
    %476 = vmatprep.subr.mxu0 0.0
    %477 = vmatpush1.msra.mxu0 %v193
    %478 = vmatprep.subr.mxu0 0.0
    %479 = vmatpush1.msra.mxu0 %v194
    %480 = vmatprep.subr.mxu0 0.0
    %481 = vmatpush1.msra.mxu0 %v195
    %482 = vmatprep.subr.mxu0 0.0
    %483 = vmatpush1.msra.mxu0 %v196
    %484 = vmatprep.subr.mxu0 0.0
    %485 = vmatpush1.msra.mxu0 %v197
    %486 = vmatprep.mubr.f32.mxu0 %v151
    %487 = vmatmul.mubr.f32.gmra.mrb[0].mxu0 %v150
    %v488 = vpop.f32.mrb[0].mxu0
    %v489 = vadd.f32 0.0, %v488
    %v490 = vpop.f32.mrb[0].mxu0
    %491 = vdwg.mxu0
    %492 = vmatprep.subr.mxu0 0.0
    %493 = vmatpush1.msra.mxu0 %v198
    %494 = vmatprep.subr.mxu0 0.0
    %495 = vmatpush1.msra.mxu0 %v199
    %496 = vmatprep.subr.mxu0 0.0
    %497 = vmatpush1.msra.mxu0 %v200
    %498 = vmatprep.subr.mxu0 0.0
    %499 = vmatpush1.msra.mxu0 %v201
    %500 = vmatprep.subr.mxu0 0.0
    %501 = vmatpush1.msra.mxu0 %v202
    %502 = vmatprep.subr.mxu0 0.0
    %503 = vmatpush1.msra.mxu0 %v203
    %504 = vmatprep.subr.mxu0 0.0
    %505 = vmatpush1.msra.mxu0 %v204
    %506 = vmatprep.subr.mxu0 0.0
    %507 = vmatpush1.msra.mxu0 %v205
    %508 = vmatprep.subr.mxu0 0.0
    %509 = vmatpush1.msra.mxu0 %v206
    %510 = vmatprep.subr.mxu0 0.0
    %511 = vmatpush1.msra.mxu0 %v207
    %512 = vmatprep.subr.mxu0 0.0
    %513 = vmatpush1.msra.mxu0 %v208
    %514 = vmatprep.subr.mxu0 0.0
    %515 = vmatpush1.msra.mxu0 %v209
    %516 = vmatprep.subr.mxu0 0.0
    %517 = vmatpush1.msra.mxu0 %v210
    %518 = vmatprep.subr.mxu0 0.0
    %519 = vmatpush1.msra.mxu0 %v211
    %520 = vmatprep.subr.mxu0 0.0
    %521 = vmatpush1.msra.mxu0 %v212
    %522 = vmatprep.subr.mxu0 0.0
    %523 = vmatpush1.msra.mxu0 %v213
    %524 = vmatprep.subr.mxu0 0.0
    %525 = vmatpush1.msra.mxu0 %v214
    %526 = vmatprep.subr.mxu0 0.0
    %527 = vmatpush1.msra.mxu0 %v215
    %528 = vmatprep.subr.mxu0 0.0
    %529 = vmatpush1.msra.mxu0 %v216
    %530 = vmatprep.subr.mxu0 0.0
    %531 = vmatpush1.msra.mxu0 %v217
    %532 = vmatprep.subr.mxu0 0.0
    %533 = vmatpush1.msra.mxu0 %v218
    %534 = vmatprep.subr.mxu0 0.0
    %535 = vmatpush1.msra.mxu0 %v219
    %536 = vmatprep.subr.mxu0 0.0
    %537 = vmatpush1.msra.mxu0 %v220
    %538 = vmatprep.subr.mxu0 0.0
    %539 = vmatpush1.msra.mxu0 %v221
    %540 = vmatprep.subr.mxu0 0.0
    %541 = vmatpush1.msra.mxu0 %v222
    %542 = vmatprep.subr.mxu0 0.0
    %543 = vmatpush1.msra.mxu0 %v223
    %544 = vmatprep.subr.mxu0 0.0
    %545 = vmatpush1.msra.mxu0 %v224
    %546 = vmatprep.subr.mxu0 0.0
    %547 = vmatpush1.msra.mxu0 %v225
    %548 = vmatprep.subr.mxu0 0.0
    %549 = vmatpush1.msra.mxu0 %v226
    %550 = vmatprep.subr.mxu0 0.0
    %551 = vmatpush1.msra.mxu0 %v227
    %552 = vmatprep.subr.mxu0 0.0
    %553 = vmatpush1.msra.mxu0 %v228
    %554 = vmatprep.subr.mxu0 0.0
    %555 = vmatpush1.msra.mxu0 %v229
    %556 = vmatprep.mubr.f32.mxu0 %v153
    %557 = vmatmul.mubr.f32.gmra.mrb[0].mxu0 %v152
    %v558 = vpop.f32.mrb[0].mxu0
    %v559 = vadd.f32 %v489, %v558
    %v560 = vpop.f32.mrb[0].mxu0
    %561 = vdwg.mxu0
    %562 = vmatprep.subr.mxu0 0.0
    %563 = vmatpush1.msra.mxu0 %v230
    %564 = vmatprep.subr.mxu0 0.0
    %565 = vmatpush1.msra.mxu0 %v231
    %566 = vmatprep.subr.mxu0 0.0
    %567 = vmatpush1.msra.mxu0 %v232
    %568 = vmatprep.subr.mxu0 0.0
    %569 = vmatpush1.msra.mxu0 %v233
    %570 = vmatprep.subr.mxu0 0.0
    %571 = vmatpush1.msra.mxu0 %v234
    %572 = vmatprep.subr.mxu0 0.0
    %573 = vmatpush1.msra.mxu0 %v235
    %574 = vmatprep.subr.mxu0 0.0
    %575 = vmatpush1.msra.mxu0 %v236
    %576 = vmatprep.subr.mxu0 0.0
    %577 = vmatpush1.msra.mxu0 %v237
    %578 = vmatprep.subr.mxu0 0.0
    %579 = vmatpush1.msra.mxu0 %v238
    %580 = vmatprep.subr.mxu0 0.0
    %581 = vmatpush1.msra.mxu0 %v239
    %582 = vmatprep.subr.mxu0 0.0
    %583 = vmatpush1.msra.mxu0 %v240
    %584 = vmatprep.subr.mxu0 0.0
    %585 = vmatpush1.msra.mxu0 %v241
    %586 = vmatprep.subr.mxu0 0.0
    %587 = vmatpush1.msra.mxu0 %v242
    %588 = vmatprep.subr.mxu0 0.0
    %589 = vmatpush1.msra.mxu0 %v243
    %590 = vmatprep.subr.mxu0 0.0
    %591 = vmatpush1.msra.mxu0 %v244
    %592 = vmatprep.subr.mxu0 0.0
    %593 = vmatpush1.msra.mxu0 %v245
    %594 = vmatprep.subr.mxu0 0.0
    %595 = vmatpush1.msra.mxu0 %v246
    %596 = vmatprep.subr.mxu0 0.0
    %597 = vmatpush1.msra.mxu0 %v247
    %598 = vmatprep.subr.mxu0 0.0
    %599 = vmatpush1.msra.mxu0 %v248
    %600 = vmatprep.subr.mxu0 0.0
    %601 = vmatpush1.msra.mxu0 %v249
    %602 = vmatprep.subr.mxu0 0.0
    %603 = vmatpush1.msra.mxu0 %v250
    %604 = vmatprep.subr.mxu0 0.0
    %605 = vmatpush1.msra.mxu0 %v251
    %606 = vmatprep.subr.mxu0 0.0
    %607 = vmatpush1.msra.mxu0 %v252
    %608 = vmatprep.subr.mxu0 0.0
    %609 = vmatpush1.msra.mxu0 %v253
    %610 = vmatprep.subr.mxu0 0.0
    %611 = vmatpush1.msra.mxu0 %v254
    %612 = vmatprep.subr.mxu0 0.0
    %613 = vmatpush1.msra.mxu0 %v255
    %614 = vmatprep.subr.mxu0 0.0
    %615 = vmatpush1.msra.mxu0 %v256
    %616 = vmatprep.subr.mxu0 0.0
    %617 = vmatpush1.msra.mxu0 %v257
    %618 = vmatprep.subr.mxu0 0.0
    %619 = vmatpush1.msra.mxu0 %v258
    %620 = vmatprep.subr.mxu0 0.0
    %621 = vmatpush1.msra.mxu0 %v259
    %622 = vmatprep.subr.mxu0 0.0
    %623 = vmatpush1.msra.mxu0 %v260
    %624 = vmatprep.subr.mxu0 0.0
    %625 = vmatpush1.msra.mxu0 %v261
    %626 = vmatprep.mubr.f32.mxu0 %v155
    %627 = vmatmul.mubr.f32.gmra.mrb[0].mxu0 %v154
    %v628 = vpop.f32.mrb[0].mxu0
    %v629 = vadd.f32 %v559, %v628
    %v630 = vpop.f32.mrb[0].mxu0
    %631 = vdwg.mxu0
    %632 = vmatprep.subr.mxu0 0.0
    %633 = vmatpush1.msra.mxu0 %v262
    %634 = vmatprep.subr.mxu0 0.0
    %635 = vmatpush1.msra.mxu0 %v263
    %636 = vmatprep.subr.mxu0 0.0
    %637 = vmatpush1.msra.mxu0 %v264
    %638 = vmatprep.subr.mxu0 0.0
    %639 = vmatpush1.msra.mxu0 %v265
    %640 = vmatprep.subr.mxu0 0.0
    %641 = vmatpush1.msra.mxu0 %v266
    %642 = vmatprep.subr.mxu0 0.0
    %643 = vmatpush1.msra.mxu0 %v267
    %644 = vmatprep.subr.mxu0 0.0
    %645 = vmatpush1.msra.mxu0 %v268
    %646 = vmatprep.subr.mxu0 0.0
    %647 = vmatpush1.msra.mxu0 %v269
    %648 = vmatprep.subr.mxu0 0.0
    %649 = vmatpush1.msra.mxu0 %v270
    %650 = vmatprep.subr.mxu0 0.0
    %651 = vmatpush1.msra.mxu0 %v271
    %652 = vmatprep.subr.mxu0 0.0
    %653 = vmatpush1.msra.mxu0 %v272
    %654 = vmatprep.subr.mxu0 0.0
    %655 = vmatpush1.msra.mxu0 %v273
    %656 = vmatprep.subr.mxu0 0.0
    %657 = vmatpush1.msra.mxu0 %v274
    %658 = vmatprep.subr.mxu0 0.0
    %659 = vmatpush1.msra.mxu0 %v275
    %660 = vmatprep.subr.mxu0 0.0
    %661 = vmatpush1.msra.mxu0 %v276
    %662 = vmatprep.subr.mxu0 0.0
    %663 = vmatpush1.msra.mxu0 %v277
    %664 = vmatprep.subr.mxu0 0.0
    %665 = vmatpush1.msra.mxu0 %v278
    %666 = vmatprep.subr.mxu0 0.0
    %667 = vmatpush1.msra.mxu0 %v279
    %668 = vmatprep.subr.mxu0 0.0
    %669 = vmatpush1.msra.mxu0 %v280
    %670 = vmatprep.subr.mxu0 0.0
    %671 = vmatpush1.msra.mxu0 %v281
    %672 = vmatprep.subr.mxu0 0.0
    %673 = vmatpush1.msra.mxu0 %v282
    %674 = vmatprep.subr.mxu0 0.0
    %675 = vmatpush1.msra.mxu0 %v283
    %676 = vmatprep.subr.mxu0 0.0
    %677 = vmatpush1.msra.mxu0 %v284
    %678 = vmatprep.subr.mxu0 0.0
    %679 = vmatpush1.msra.mxu0 %v285
    %680 = vmatprep.subr.mxu0 0.0
    %681 = vmatpush1.msra.mxu0 %v286
    %682 = vmatprep.subr.mxu0 0.0
    %683 = vmatpush1.msra.mxu0 %v287
    %684 = vmatprep.subr.mxu0 0.0
    %685 = vmatpush1.msra.mxu0 %v288
    %686 = vmatprep.subr.mxu0 0.0
    %687 = vmatpush1.msra.mxu0 %v289
    %688 = vmatprep.subr.mxu0 0.0
    %689 = vmatpush1.msra.mxu0 %v290
    %690 = vmatprep.subr.mxu0 0.0
    %691 = vmatpush1.msra.mxu0 %v291
    %692 = vmatprep.subr.mxu0 0.0
    %693 = vmatpush1.msra.mxu0 %v292
    %694 = vmatprep.subr.mxu0 0.0
    %695 = vmatpush1.msra.mxu0 %v293
    %696 = vmatprep.mubr.f32.mxu0 %v157
    %697 = vmatmul.mubr.f32.gmra.mrb[0].mxu0 %v156
    %v698 = vpop.f32.mrb[0].mxu0
    %v699 = vadd.f32 %v629, %v698
    %v700 = vpop.f32.mrb[0].mxu0
    %701 = vdwg.mxu0
    %702 = vmatprep.subr.mxu0 0.0
    %703 = vmatpush1.msra.mxu0 %v294
    %704 = vmatprep.subr.mxu0 0.0
    %705 = vmatpush1.msra.mxu0 %v295
    %706 = vmatprep.subr.mxu0 0.0
    %707 = vmatpush1.msra.mxu0 %v296
    %708 = vmatprep.subr.mxu0 0.0
    %709 = vmatpush1.msra.mxu0 %v297
    %710 = vmatprep.subr.mxu0 0.0
    %711 = vmatpush1.msra.mxu0 %v298
    %712 = vmatprep.subr.mxu0 0.0
    %713 = vmatpush1.msra.mxu0 %v299
    %714 = vmatprep.subr.mxu0 0.0
    %715 = vmatpush1.msra.mxu0 %v300
    %716 = vmatprep.subr.mxu0 0.0
    %717 = vmatpush1.msra.mxu0 %v301
    %718 = vmatprep.subr.mxu0 0.0
    %719 = vmatpush1.msra.mxu0 %v302
    %720 = vmatprep.subr.mxu0 0.0
    %721 = vmatpush1.msra.mxu0 %v303
    %722 = vmatprep.subr.mxu0 0.0
    %723 = vmatpush1.msra.mxu0 %v304
    %724 = vmatprep.subr.mxu0 0.0
    %725 = vmatpush1.msra.mxu0 %v305
    %726 = vmatprep.subr.mxu0 0.0
    %727 = vmatpush1.msra.mxu0 %v306
    %728 = vmatprep.subr.mxu0 0.0
    %729 = vmatpush1.msra.mxu0 %v307
    %730 = vmatprep.subr.mxu0 0.0
    %731 = vmatpush1.msra.mxu0 %v308
    %732 = vmatprep.subr.mxu0 0.0
    %733 = vmatpush1.msra.mxu0 %v309
    %734 = vmatprep.subr.mxu0 0.0
    %735 = vmatpush1.msra.mxu0 %v310
    %736 = vmatprep.subr.mxu0 0.0
    %737 = vmatpush1.msra.mxu0 %v311
    %738 = vmatprep.subr.mxu0 0.0
    %739 = vmatpush1.msra.mxu0 %v312
    %740 = vmatprep.subr.mxu0 0.0
    %741 = vmatpush1.msra.mxu0 %v313
    %742 = vmatprep.subr.mxu0 0.0
    %743 = vmatpush1.msra.mxu0 %v314
    %744 = vmatprep.subr.mxu0 0.0
    %745 = vmatpush1.msra.mxu0 %v315
    %746 = vmatprep.subr.mxu0 0.0
    %747 = vmatpush1.msra.mxu0 %v316
    %748 = vmatprep.subr.mxu0 0.0
    %749 = vmatpush1.msra.mxu0 %v317
    %750 = vmatprep.subr.mxu0 0.0
    %751 = vmatpush1.msra.mxu0 %v318
    %752 = vmatprep.subr.mxu0 0.0
    %753 = vmatpush1.msra.mxu0 %v319
    %754 = vmatprep.subr.mxu0 0.0
    %755 = vmatpush1.msra.mxu0 %v320
    %756 = vmatprep.subr.mxu0 0.0
    %757 = vmatpush1.msra.mxu0 %v321
    %758 = vmatprep.subr.mxu0 0.0
    %759 = vmatpush1.msra.mxu0 %v322
    %760 = vmatprep.subr.mxu0 0.0
    %761 = vmatpush1.msra.mxu0 %v323
    %762 = vmatprep.subr.mxu0 0.0
    %763 = vmatpush1.msra.mxu0 %v324
    %764 = vmatprep.subr.mxu0 0.0
    %765 = vmatpush1.msra.mxu0 %v325
    %766 = vmatprep.mubr.f32.mxu0 %v159
    %767 = vmatmul.mubr.f32.gmra.mrb[0].mxu0 %v158
    %v768 = vpop.f32.mrb[0].mxu0
    %v769 = vadd.f32 %v699, %v768
    %v770 = vpop.f32.mrb[0].mxu0
    %771 = vdwg.mxu0
    %772 = vmatprep.subr.mxu0 0.0
    %773 = vmatpush1.msra.mxu0 %v326
    %774 = vmatprep.subr.mxu0 0.0
    %775 = vmatpush1.msra.mxu0 %v327
    %776 = vmatprep.subr.mxu0 0.0
    %777 = vmatpush1.msra.mxu0 %v328
    %778 = vmatprep.subr.mxu0 0.0
    %779 = vmatpush1.msra.mxu0 %v329
    %780 = vmatprep.subr.mxu0 0.0
    %781 = vmatpush1.msra.mxu0 %v330
    %782 = vmatprep.subr.mxu0 0.0
    %783 = vmatpush1.msra.mxu0 %v331
    %784 = vmatprep.subr.mxu0 0.0
    %785 = vmatpush1.msra.mxu0 %v332
    %786 = vmatprep.subr.mxu0 0.0
    %787 = vmatpush1.msra.mxu0 %v333
    %788 = vmatprep.subr.mxu0 0.0
    %789 = vmatpush1.msra.mxu0 %v334
    %790 = vmatprep.subr.mxu0 0.0
    %791 = vmatpush1.msra.mxu0 %v335
    %792 = vmatprep.subr.mxu0 0.0
    %793 = vmatpush1.msra.mxu0 %v336
    %794 = vmatprep.subr.mxu0 0.0
    %795 = vmatpush1.msra.mxu0 %v337
    %796 = vmatprep.subr.mxu0 0.0
    %797 = vmatpush1.msra.mxu0 %v338
    %798 = vmatprep.subr.mxu0 0.0
    %799 = vmatpush1.msra.mxu0 %v339
    %800 = vmatprep.subr.mxu0 0.0
    %801 = vmatpush1.msra.mxu0 %v340
    %802 = vmatprep.subr.mxu0 0.0
    %803 = vmatpush1.msra.mxu0 %v341
    %804 = vmatprep.subr.mxu0 0.0
    %805 = vmatpush1.msra.mxu0 %v342
    %806 = vmatprep.subr.mxu0 0.0
    %807 = vmatpush1.msra.mxu0 %v343
    %808 = vmatprep.subr.mxu0 0.0
    %809 = vmatpush1.msra.mxu0 %v344
    %810 = vmatprep.subr.mxu0 0.0
    %811 = vmatpush1.msra.mxu0 %v345
    %812 = vmatprep.subr.mxu0 0.0
    %813 = vmatpush1.msra.mxu0 %v346
    %814 = vmatprep.subr.mxu0 0.0
    %815 = vmatpush1.msra.mxu0 %v347
    %816 = vmatprep.subr.mxu0 0.0
    %817 = vmatpush1.msra.mxu0 %v348
    %818 = vmatprep.subr.mxu0 0.0
    %819 = vmatpush1.msra.mxu0 %v349
    %820 = vmatprep.subr.mxu0 0.0
    %821 = vmatpush1.msra.mxu0 %v350
    %822 = vmatprep.subr.mxu0 0.0
    %823 = vmatpush1.msra.mxu0 %v351
    %824 = vmatprep.subr.mxu0 0.0
    %825 = vmatpush1.msra.mxu0 %v352
    %826 = vmatprep.subr.mxu0 0.0
    %827 = vmatpush1.msra.mxu0 %v353
    %828 = vmatprep.subr.mxu0 0.0
    %829 = vmatpush1.msra.mxu0 %v354
    %830 = vmatprep.subr.mxu0 0.0
    %831 = vmatpush1.msra.mxu0 %v355
    %832 = vmatprep.subr.mxu0 0.0
    %833 = vmatpush1.msra.mxu0 %v356
    %834 = vmatprep.subr.mxu0 0.0
    %835 = vmatpush1.msra.mxu0 %v357
    %836 = vmatprep.mubr.f32.mxu0 %v161
    %837 = vmatmul.mubr.f32.gmra.mrb[0].mxu0 %v160
    %v838 = vpop.f32.mrb[0].mxu0
    %v839 = vadd.f32 %v769, %v838
    %v840 = vpop.f32.mrb[0].mxu0
    %841 = vdwg.mxu0
    %842 = vmatprep.subr.mxu0 0.0
    %843 = vmatpush1.msra.mxu0 %v358
    %844 = vmatprep.subr.mxu0 0.0
    %845 = vmatpush1.msra.mxu0 %v359
    %846 = vmatprep.subr.mxu0 0.0
    %847 = vmatpush1.msra.mxu0 %v360
    %848 = vmatprep.subr.mxu0 0.0
    %849 = vmatpush1.msra.mxu0 %v361
    %850 = vmatprep.subr.mxu0 0.0
    %851 = vmatpush1.msra.mxu0 %v362
    %852 = vmatprep.subr.mxu0 0.0
    %853 = vmatpush1.msra.mxu0 %v363
    %854 = vmatprep.subr.mxu0 0.0
    %855 = vmatpush1.msra.mxu0 %v364
    %856 = vmatprep.subr.mxu0 0.0
    %857 = vmatpush1.msra.mxu0 %v365
    %858 = vmatprep.subr.mxu0 0.0
    %859 = vmatpush1.msra.mxu0 %v366
    %860 = vmatprep.subr.mxu0 0.0
    %861 = vmatpush1.msra.mxu0 %v367
    %862 = vmatprep.subr.mxu0 0.0
    %863 = vmatpush1.msra.mxu0 %v368
    %864 = vmatprep.subr.mxu0 0.0
    %865 = vmatpush1.msra.mxu0 %v369
    %866 = vmatprep.subr.mxu0 0.0
    %867 = vmatpush1.msra.mxu0 %v370
    %868 = vmatprep.subr.mxu0 0.0
    %869 = vmatpush1.msra.mxu0 %v371
    %870 = vmatprep.subr.mxu0 0.0
    %871 = vmatpush1.msra.mxu0 %v372
    %872 = vmatprep.subr.mxu0 0.0
    %873 = vmatpush1.msra.mxu0 %v373
    %874 = vmatprep.subr.mxu0 0.0
    %875 = vmatpush1.msra.mxu0 %v374
    %876 = vmatprep.subr.mxu0 0.0
    %877 = vmatpush1.msra.mxu0 %v375
    %878 = vmatprep.subr.mxu0 0.0
    %879 = vmatpush1.msra.mxu0 %v376
    %880 = vmatprep.subr.mxu0 0.0
    %881 = vmatpush1.msra.mxu0 %v377
    %882 = vmatprep.subr.mxu0 0.0
    %883 = vmatpush1.msra.mxu0 %v378
    %884 = vmatprep.subr.mxu0 0.0
    %885 = vmatpush1.msra.mxu0 %v379
    %886 = vmatprep.subr.mxu0 0.0
    %887 = vmatpush1.msra.mxu0 %v380
    %888 = vmatprep.subr.mxu0 0.0
    %889 = vmatpush1.msra.mxu0 %v381
    %890 = vmatprep.subr.mxu0 0.0
    %891 = vmatpush1.msra.mxu0 %v382
    %892 = vmatprep.subr.mxu0 0.0
    %893 = vmatpush1.msra.mxu0 %v383
    %894 = vmatprep.subr.mxu0 0.0
    %895 = vmatpush1.msra.mxu0 %v384
    %896 = vmatprep.subr.mxu0 0.0
    %897 = vmatpush1.msra.mxu0 %v385
    %898 = vmatprep.subr.mxu0 0.0
    %899 = vmatpush1.msra.mxu0 %v386
    %900 = vmatprep.subr.mxu0 0.0
    %901 = vmatpush1.msra.mxu0 %v387
    %902 = vmatprep.subr.mxu0 0.0
    %903 = vmatpush1.msra.mxu0 %v388
    %904 = vmatprep.subr.mxu0 0.0
    %905 = vmatpush1.msra.mxu0 %v389
    %906 = vmatprep.mubr.f32.mxu0 %v163
    %907 = vmatmul.mubr.f32.gmra.mrb[0].mxu0 %v162
    %v908 = vpop.f32.mrb[0].mxu0
    %v909 = vadd.f32 %v839, %v908
    %v910 = vpop.f32.mrb[0].mxu0
    %911 = vdwg.mxu0
    %912 = vmatprep.subr.mxu0 0.0
    %913 = vmatpush1.msra.mxu0 %v390
    %914 = vmatprep.subr.mxu0 0.0
    %915 = vmatpush1.msra.mxu0 %v391
    %916 = vmatprep.subr.mxu0 0.0
    %917 = vmatpush1.msra.mxu0 %v392
    %918 = vmatprep.subr.mxu0 0.0
    %919 = vmatpush1.msra.mxu0 %v393
    %920 = vmatprep.subr.mxu0 0.0
    %921 = vmatpush1.msra.mxu0 %v394
    %922 = vmatprep.subr.mxu0 0.0
    %923 = vmatpush1.msra.mxu0 %v395
    %924 = vmatprep.subr.mxu0 0.0
    %925 = vmatpush1.msra.mxu0 %v396
    %926 = vmatprep.subr.mxu0 0.0
    %927 = vmatpush1.msra.mxu0 %v397
    %928 = vmatprep.subr.mxu0 0.0
    %929 = vmatpush1.msra.mxu0 %v398
    %930 = vmatprep.subr.mxu0 0.0
    %931 = vmatpush1.msra.mxu0 %v399
    %932 = vmatprep.subr.mxu0 0.0
    %933 = vmatpush1.msra.mxu0 %v400
    %934 = vmatprep.subr.mxu0 0.0
    %935 = vmatpush1.msra.mxu0 %v401
    %936 = vmatprep.subr.mxu0 0.0
    %937 = vmatpush1.msra.mxu0 %v402
    %938 = vmatprep.subr.mxu0 0.0
    %939 = vmatpush1.msra.mxu0 %v403
    %940 = vmatprep.subr.mxu0 0.0
    %941 = vmatpush1.msra.mxu0 %v404
    %942 = vmatprep.subr.mxu0 0.0
    %943 = vmatpush1.msra.mxu0 %v405
    %944 = vmatprep.subr.mxu0 0.0
    %945 = vmatpush1.msra.mxu0 %v406
    %946 = vmatprep.subr.mxu0 0.0
    %947 = vmatpush1.msra.mxu0 %v407
    %948 = vmatprep.subr.mxu0 0.0
    %949 = vmatpush1.msra.mxu0 %v408
    %950 = vmatprep.subr.mxu0 0.0
    %951 = vmatpush1.msra.mxu0 %v409
    %952 = vmatprep.subr.mxu0 0.0
    %953 = vmatpush1.msra.mxu0 %v410
    %954 = vmatprep.subr.mxu0 0.0
    %955 = vmatpush1.msra.mxu0 %v411
    %956 = vmatprep.subr.mxu0 0.0
    %957 = vmatpush1.msra.mxu0 %v412
    %958 = vmatprep.subr.mxu0 0.0
    %959 = vmatpush1.msra.mxu0 %v413
    %960 = vmatprep.subr.mxu0 0.0
    %961 = vmatpush1.msra.mxu0 %v414
    %962 = vmatprep.subr.mxu0 0.0
    %963 = vmatpush1.msra.mxu0 %v415
    %964 = vmatprep.subr.mxu0 0.0
    %965 = vmatpush1.msra.mxu0 %v416
    %966 = vmatprep.subr.mxu0 0.0
    %967 = vmatpush1.msra.mxu0 %v417
    %968 = vmatprep.subr.mxu0 0.0
    %969 = vmatpush1.msra.mxu0 %v418
    %970 = vmatprep.subr.mxu0 0.0
    %971 = vmatpush1.msra.mxu0 %v419
    %972 = vmatprep.subr.mxu0 0.0
    %973 = vmatpush1.msra.mxu0 %v420
    %974 = vmatprep.subr.mxu0 0.0
    %975 = vmatpush1.msra.mxu0 %v421
    %976 = vmatprep.mubr.f32.mxu0 %v165
    %977 = vmatmul.mubr.f32.gmra.mrb[0].mxu0 %v164
    %v978 = vpop.f32.mrb[0].mxu0
    %v979 = vadd.f32 %v909, %v978
    %v980 = vpop.f32.mrb[0].mxu0
    %981 = vdwg.mxu0
    %982 = vmatprep.subr.mxu0 0.0
    %983 = vmatpush1.msra.mxu0 %v54
    %984 = vmatprep.subr.mxu0 0.0
    %985 = vmatpush1.msra.mxu0 %v55
    %986 = vmatprep.subr.mxu0 0.0
    %987 = vmatpush1.msra.mxu0 %v56
    %988 = vmatprep.subr.mxu0 0.0
    %989 = vmatpush1.msra.mxu0 %v57
    %990 = vmatprep.subr.mxu0 0.0
    %991 = vmatpush1.msra.mxu0 %v58
    %992 = vmatprep.subr.mxu0 0.0
    %993 = vmatpush1.msra.mxu0 %v59
    %994 = vmatprep.subr.mxu0 0.0
    %995 = vmatpush1.msra.mxu0 %v60
    %996 = vmatprep.subr.mxu0 0.0
    %997 = vmatpush1.msra.mxu0 %v61
    %998 = vmatprep.subr.mxu0 0.0
    %999 = vmatpush1.msra.mxu0 %v62
    %1000 = vmatprep.subr.mxu0 0.0
    %1001 = vmatpush1.msra.mxu0 %v63
    %1002 = vmatprep.subr.mxu0 0.0
    %1003 = vmatpush1.msra.mxu0 %v64
    %1004 = vmatprep.subr.mxu0 0.0
    %1005 = vmatpush1.msra.mxu0 %v65
    %1006 = vmatprep.subr.mxu0 0.0
    %1007 = vmatpush1.msra.mxu0 %v66
    %1008 = vmatprep.subr.mxu0 0.0
    %1009 = vmatpush1.msra.mxu0 %v67
    %1010 = vmatprep.subr.mxu0 0.0
    %1011 = vmatpush1.msra.mxu0 %v68
    %1012 = vmatprep.subr.mxu0 0.0
    %1013 = vmatpush1.msra.mxu0 %v69
    %1014 = vmatprep.subr.mxu0 0.0
    %1015 = vmatpush1.msra.mxu0 %v70
    %1016 = vmatprep.subr.mxu0 0.0
    %1017 = vmatpush1.msra.mxu0 %v71
    %1018 = vmatprep.subr.mxu0 0.0
    %1019 = vmatpush1.msra.mxu0 %v72
    %1020 = vmatprep.subr.mxu0 0.0
    %1021 = vmatpush1.msra.mxu0 %v73
    %1022 = vmatprep.subr.mxu0 0.0
    %1023 = vmatpush1.msra.mxu0 %v74
    %1024 = vmatprep.subr.mxu0 0.0
    %1025 = vmatpush1.msra.mxu0 %v75
    %1026 = vmatprep.subr.mxu0 0.0
    %1027 = vmatpush1.msra.mxu0 %v76
    %1028 = vmatprep.subr.mxu0 0.0
    %1029 = vmatpush1.msra.mxu0 %v77
    %1030 = vmatprep.subr.mxu0 0.0
    %1031 = vmatpush1.msra.mxu0 %v78
    %1032 = vmatprep.subr.mxu0 0.0
    %1033 = vmatpush1.msra.mxu0 %v79
    %1034 = vmatprep.subr.mxu0 0.0
    %1035 = vmatpush1.msra.mxu0 %v80
    %1036 = vmatprep.subr.mxu0 0.0
    %1037 = vmatpush1.msra.mxu0 %v81
    %1038 = vmatprep.subr.mxu0 0.0
    %1039 = vmatpush1.msra.mxu0 %v82
    %1040 = vmatprep.subr.mxu0 0.0
    %1041 = vmatpush1.msra.mxu0 %v83
    %1042 = vmatprep.subr.mxu0 0.0
    %1043 = vmatpush1.msra.mxu0 %v84
    %1044 = vmatprep.subr.mxu0 0.0
    %1045 = vmatpush1.msra.mxu0 %v85
    %1046 = vmatprep.mubr.f32.mxu0 %v49
    %1047 = vmatmul.mubr.f32.gmra.mrb[0].mxu0 %v48
    %v1048 = vpop.f32.mrb[0].mxu0
    %v1049 = vadd.f32 %v979, %v1048
    %v1050 = vpop.f32.mrb[0].mxu0
    %1051 = vdwg.mxu0
    %1052 = vmatprep.subr.mxu0 0.0
    %1053 = vmatpush1.msra.mxu0 %v86
    %1054 = vmatprep.subr.mxu0 0.0
    %1055 = vmatpush1.msra.mxu0 %v87
    %1056 = vmatprep.subr.mxu0 0.0
    %1057 = vmatpush1.msra.mxu0 %v88
    %1058 = vmatprep.subr.mxu0 0.0
    %1059 = vmatpush1.msra.mxu0 %v89
    %1060 = vmatprep.subr.mxu0 0.0
    %1061 = vmatpush1.msra.mxu0 %v90
    %1062 = vmatprep.subr.mxu0 0.0
    %1063 = vmatpush1.msra.mxu0 %v91
    %1064 = vmatprep.subr.mxu0 0.0
    %1065 = vmatpush1.msra.mxu0 %v92
    %1066 = vmatprep.subr.mxu0 0.0
    %1067 = vmatpush1.msra.mxu0 %v93
    %1068 = vmatprep.subr.mxu0 0.0
    %1069 = vmatpush1.msra.mxu0 %v94
    %1070 = vmatprep.subr.mxu0 0.0
    %1071 = vmatpush1.msra.mxu0 %v95
    %1072 = vmatprep.subr.mxu0 0.0
    %1073 = vmatpush1.msra.mxu0 %v96
    %1074 = vmatprep.subr.mxu0 0.0
    %1075 = vmatpush1.msra.mxu0 %v97
    %1076 = vmatprep.subr.mxu0 0.0
    %1077 = vmatpush1.msra.mxu0 %v98
    %1078 = vmatprep.subr.mxu0 0.0
    %1079 = vmatpush1.msra.mxu0 %v99
    %1080 = vmatprep.subr.mxu0 0.0
    %1081 = vmatpush1.msra.mxu0 %v100
    %1082 = vmatprep.subr.mxu0 0.0
    %1083 = vmatpush1.msra.mxu0 %v101
    %1084 = vmatprep.subr.mxu0 0.0
    %1085 = vmatpush1.msra.mxu0 %v102
    %1086 = vmatprep.subr.mxu0 0.0
    %1087 = vmatpush1.msra.mxu0 %v103
    %1088 = vmatprep.subr.mxu0 0.0
    %1089 = vmatpush1.msra.mxu0 %v104
    %1090 = vmatprep.subr.mxu0 0.0
    %1091 = vmatpush1.msra.mxu0 %v105
    %1092 = vmatprep.subr.mxu0 0.0
    %1093 = vmatpush1.msra.mxu0 %v106
    %1094 = vmatprep.subr.mxu0 0.0
    %1095 = vmatpush1.msra.mxu0 %v107
    %1096 = vmatprep.subr.mxu0 0.0
    %1097 = vmatpush1.msra.mxu0 %v108
    %1098 = vmatprep.subr.mxu0 0.0
    %1099 = vmatpush1.msra.mxu0 %v109
    %1100 = vmatprep.subr.mxu0 0.0
    %1101 = vmatpush1.msra.mxu0 %v110
    %1102 = vmatprep.subr.mxu0 0.0
    %1103 = vmatpush1.msra.mxu0 %v111
    %1104 = vmatprep.subr.mxu0 0.0
    %1105 = vmatpush1.msra.mxu0 %v112
    %1106 = vmatprep.subr.mxu0 0.0
    %1107 = vmatpush1.msra.mxu0 %v113
    %1108 = vmatprep.subr.mxu0 0.0
    %1109 = vmatpush1.msra.mxu0 %v114
    %1110 = vmatprep.subr.mxu0 0.0
    %1111 = vmatpush1.msra.mxu0 %v115
    %1112 = vmatprep.subr.mxu0 0.0
    %1113 = vmatpush1.msra.mxu0 %v116
    %1114 = vmatprep.subr.mxu0 0.0
    %1115 = vmatpush1.msra.mxu0 %v117
    %1116 = vmatprep.mubr.f32.mxu0 %v51
    %1117 = vmatmul.mubr.f32.gmra.mrb[0].mxu0 %v50
    %v1118 = vpop.f32.mrb[0].mxu0
    %v1119 = vadd.f32 %v1049, %v1118
    %v1120 = vpop.f32.mrb[0].mxu0
    %1121 = vdwg.mxu0
    %1122 = vmatprep.subr.mxu0 0.0
    %1123 = vmatpush1.msra.mxu0 %v118
    %1124 = vmatprep.subr.mxu0 0.0
    %1125 = vmatpush1.msra.mxu0 %v119
    %1126 = vmatprep.subr.mxu0 0.0
    %1127 = vmatpush1.msra.mxu0 %v120
    %1128 = vmatprep.subr.mxu0 0.0
    %1129 = vmatpush1.msra.mxu0 %v121
    %1130 = vmatprep.subr.mxu0 0.0
    %1131 = vmatpush1.msra.mxu0 %v122
    %1132 = vmatprep.subr.mxu0 0.0
    %1133 = vmatpush1.msra.mxu0 %v123
    %1134 = vmatprep.subr.mxu0 0.0
    %1135 = vmatpush1.msra.mxu0 %v124
    %1136 = vmatprep.subr.mxu0 0.0
    %1137 = vmatpush1.msra.mxu0 %v125
    %1138 = vmatprep.subr.mxu0 0.0
    %1139 = vmatpush1.msra.mxu0 %v126
    %1140 = vmatprep.subr.mxu0 0.0
    %1141 = vmatpush1.msra.mxu0 %v127
    %1142 = vmatprep.subr.mxu0 0.0
    %1143 = vmatpush1.msra.mxu0 %v128
    %1144 = vmatprep.subr.mxu0 0.0
    %1145 = vmatpush1.msra.mxu0 %v129
    %1146 = vmatprep.subr.mxu0 0.0
    %1147 = vmatpush1.msra.mxu0 %v130
    %1148 = vmatprep.subr.mxu0 0.0
    %1149 = vmatpush1.msra.mxu0 %v131
    %1150 = vmatprep.subr.mxu0 0.0
    %1151 = vmatpush1.msra.mxu0 %v132
    %1152 = vmatprep.subr.mxu0 0.0
    %1153 = vmatpush1.msra.mxu0 %v133
    %1154 = vmatprep.subr.mxu0 0.0
    %1155 = vmatpush1.msra.mxu0 %v134
    %1156 = vmatprep.subr.mxu0 0.0
    %1157 = vmatpush1.msra.mxu0 %v135
    %1158 = vmatprep.subr.mxu0 0.0
    %1159 = vmatpush1.msra.mxu0 %v136
    %1160 = vmatprep.subr.mxu0 0.0
    %1161 = vmatpush1.msra.mxu0 %v137
    %1162 = vmatprep.subr.mxu0 0.0
    %1163 = vmatpush1.msra.mxu0 %v138
    %1164 = vmatprep.subr.mxu0 0.0
    %1165 = vmatpush1.msra.mxu0 %v139
    %1166 = vmatprep.subr.mxu0 0.0
    %1167 = vmatpush1.msra.mxu0 %v140
    %1168 = vmatprep.subr.mxu0 0.0
    %1169 = vmatpush1.msra.mxu0 %v141
    %1170 = vmatprep.subr.mxu0 0.0
    %1171 = vmatpush1.msra.mxu0 %v142
    %1172 = vmatprep.subr.mxu0 0.0
    %1173 = vmatpush1.msra.mxu0 %v143
    %1174 = vmatprep.subr.mxu0 0.0
    %1175 = vmatpush1.msra.mxu0 %v144
    %1176 = vmatprep.subr.mxu0 0.0
    %1177 = vmatpush1.msra.mxu0 %v145
    %1178 = vmatprep.subr.mxu0 0.0
    %1179 = vmatpush1.msra.mxu0 %v146
    %1180 = vmatprep.subr.mxu0 0.0
    %1181 = vmatpush1.msra.mxu0 %v147
    %1182 = vmatprep.subr.mxu0 0.0
    %1183 = vmatpush1.msra.mxu0 %v148
    %1184 = vmatprep.subr.mxu0 0.0
    %1185 = vmatpush1.msra.mxu0 %v149
    %1186 = vmatprep.mubr.f32.mxu0 %v53
    %1187 = vmatmul.mubr.f32.gmra.mrb[0].mxu0 %v52
    %v1188 = vpop.f32.mrb[0].mxu0
    %v1189 = vadd.f32 %v1119, %v1188
    %v1190 = vpop.f32.mrb[0].mxu0
    %1191 = vdwg.mxu0
    %v1192 = vld [vmem:[%s4] sm:$0x1]
    %v1194 = vlaneseq
    %v1195 = vshrl.u32 %v1194, 7
    %v1196 = vsub.s32 0, %v1195
    %v1197 = vrot.slane %v1192, %v1196
    %v1199 = vadd.f32 %v1189, %v1197
    %1200 = vst [vmem:[%s5] sm:$0xff] %v1199
    // Predicated region
    $region30: #{ablation_model_forward.1} parent=1 // pred_check
      _
    $region31: #{ablation_model_forward.1} parent=1 // pred_check_branch
      %1202 = sbr.rel (0) target = $region33
    $region32: #{ablation_model_forward.1} parent=1 // pred_region
      _
    $region33: #{ablation_model_forward.1} parent=1 // pred_fallthru
      _
    // Predicated region
    $region34: #{ablation_model_forward.1} parent=1 // pred_check
      _
    $region35: #{ablation_model_forward.1} parent=1 // pred_check_branch
      %1204 = sbr.rel (0) target = $region37
    $region36: #{ablation_model_forward.1} parent=1 // pred_region
      _
    $region37: #{ablation_model_forward.1} parent=1 // pred_fallthru
      _
    %1205 = vsyncpa [#allocation3], 1
    %1206 = vsyncpa [#allocation5], 1

</llo_original>
